<compile_context>
chip_gen: v7x
topology: tpu7x:2x2x1
jax: 0.10.0
libtpu: 0.0.40
codegen_flags: <defaults>
</compile_context>

<pallas_src>
import functools

import jax
import jax.numpy as jnp
from jax.experimental import pallas as pl
from jax.experimental.pallas import tpu as pltpu

_LANE = 128
_SUBLANE = 8
_MAX_TILE_V = 1024        # MXU/DMA-friendly vocab tile (review: 512-1024)
_MAX_TILE_B = 512         # keeps the f32 logits working set modest
_VMEM_TARGET = 40 << 20   # stay well inside v7x's 64 MiB physical VMEM


def _round_up(x, m):
    return ((x + m - 1) // m) * m


def _vmem_estimate(tile_b, tile_v, ep, itemsize):
    """Rough per-step VMEM working set (double-buffered inputs + temporaries)."""
    dbuf = 2 * (tile_v * ep + tile_b * ep) * itemsize   # weight + emb blocks
    temps = 6 * tile_b * tile_v * 4                     # f32 logits / exp temps
    small = 10 * tile_b * 512                           # labels/out/LSE scratch (lane padded)
    return dbuf + temps + small


def _skipgram_loss_kernel(emb_ref, w_ref, lbl_ref, out_ref,
                          m_sc, s_sc, lab_sc, *,
                          num_class, tile_v, tile_b, batch, vpad):
    """Grid = (context slot w, batch tile i, vocab tile k [reduction]).

    emb_ref: (tile_b, Ep)     bf16/f32  center embeddings (zero padded)
    w_ref:   (1, tile_v, Ep)  bf16/f32  classifier rows for (slot w, vocab tile k)
    lbl_ref: (1, tile_b, 1)   i32       context word ids for (slot w, batch tile i)
    out_ref: (1, tile_b, 1)   f32       per-row loss for (slot w, batch tile i)
    m_sc / s_sc / lab_sc: (tile_b, 1) f32 online-LSE state across vocab tiles.
    """
    i = pl.program_id(1)
    k = pl.program_id(2)
    kt = pl.num_programs(2)

    @pl.when(k == 0)
    def _init():
        m_sc[...] = jnp.full_like(m_sc, -1e30)
        s_sc[...] = jnp.zeros_like(s_sc)
        lab_sc[...] = jnp.zeros_like(lab_sc)

    # MXU: (tile_b, Ep) x (tile_v, Ep)^T -> (tile_b, tile_v), f32 accumulation.
    logits = jax.lax.dot_general(
        emb_ref[...], w_ref[0], (((1,), (1,)), ((), ())),
        preferred_element_type=jnp.float32)

    # Global vocab index of each lane in this tile (label gather + pad mask).
    vocab_idx = (jax.lax.broadcasted_iota(jnp.int32, logits.shape, 1)
                 + k * tile_v)

    def update(lg):
        # Online logsumexp across vocab tiles.
        m_prev = m_sc[...]
        m_new = jnp.maximum(m_prev, jnp.max(lg, axis=-1, keepdims=True))
        s_sc[...] = (s_sc[...] * jnp.exp(m_prev - m_new)
                     + jnp.sum(jnp.exp(lg - m_new), axis=-1, keepdims=True))
        m_sc[...] = m_new
        # The label falls in exactly one vocab tile / lane.
        lab_sc[...] += jnp.sum(
            jnp.where(vocab_idx == lbl_ref[0], lg, 0.0),
            axis=-1, keepdims=True)

    def finalize():
        row = jax.lax.broadcasted_iota(jnp.int32, (tile_b, 1), 0) + i * tile_b
        loss = m_sc[...] + jnp.log(s_sc[...]) - lab_sc[...]
        out_ref[0] = jnp.where(row < batch, loss, 0.0)

    if vpad == 0:
        # No vocab padding anywhere: mask-free update on every tile.
        update(logits)

        @pl.when(k == kt - 1)
        def _fin():
            finalize()
    else:
        # Padding only exists in the last vocab tile; gate the mask there.
        @pl.when(k < kt - 1)
        def _full_tiles():
            update(logits)

        @pl.when(k == kt - 1)
        def _last_tile():
            update(jnp.where(vocab_idx < num_class, logits, -1e30))
            finalize()


def prepare_skipgram_params(embedding_w, classifier_w, window_size, *,
                            tile_v=None, compute_dtype=jnp.bfloat16):
    """One-time parameter preparation (do this at setup, not per step).

    Casts to the MXU streaming dtype (bf16 by default), reshapes the classifier
    weight to (num_ctx, Vp, Ep) and pads V up to a multiple of tile_v and E up
    to a multiple of 128.  Zero padding is exact for the dot product; padded
    vocab rows are masked inside the kernel.
    """
    num_class, emb_dim = embedding_w.shape
    num_ctx = 2 * window_size
    assert classifier_w.shape == (num_class * num_ctx, emb_dim)

    ep = _round_up(emb_dim, _LANE)
    if tile_v is None:
        # Pick the MXU/DMA-friendly vocab tile first, then pad V up to it.
        tile_v = min(_MAX_TILE_V, _round_up(num_class, _LANE))
    assert tile_v % _LANE == 0
    vp = _round_up(num_class, tile_v)

    w3 = classifier_w.reshape(num_ctx, num_class, emb_dim).astype(compute_dtype)
    w3 = jnp.pad(w3, ((0, 0), (0, vp - num_class), (0, ep - emb_dim)))
    emb_table = jnp.pad(embedding_w.astype(compute_dtype),
                        ((0, 0), (0, ep - emb_dim)))
    return dict(emb_table=emb_table, w3=w3, num_class=num_class,
                emb_dim=emb_dim, num_ctx=num_ctx, tile_v=tile_v, vp=vp, ep=ep)


def skipgram_forward(windows, centers, params, *, tile_b=None,
                     vmem_limit_bytes=None):
    """JAX/Pallas equivalent of SkipGram.forward (eval mode).

    windows: (B, 2*window_size) int   context word ids
    centers: (B,)               int   center word ids
    params:  output of prepare_skipgram_params
    Returns (summed_loss: f32 scalar, count: int)
    """
    num_class = params["num_class"]
    num_ctx = params["num_ctx"]
    tile_v = params["tile_v"]
    vp = params["vp"]
    ep = params["ep"]
    w3 = params["w3"]
    emb_table = params["emb_table"]

    batch = centers.shape[0]
    assert windows.shape == (batch, num_ctx)

    # Prefer a single batch tile so the classifier weight streams from HBM
    # exactly once per context slot; shrink only if the VMEM budget demands it.
    if tile_b is None:
        tile_b = min(_round_up(batch, _SUBLANE), _MAX_TILE_B)
    tile_b = max(_SUBLANE, _round_up(tile_b, _SUBLANE))
    itemsize = jnp.dtype(w3.dtype).itemsize
    while (tile_b > _SUBLANE
           and _vmem_estimate(tile_b, tile_v, ep, itemsize) > _VMEM_TARGET):
        tile_b = max(_SUBLANE, _round_up(tile_b // 2, _SUBLANE))
    bp = _round_up(batch, tile_b)

    # Per-call work is tiny: gather already-padded/cast embedding rows and pad
    # the batch axis.  The big classifier weight was prepared once.
    emb = emb_table[centers]
    emb = jnp.pad(emb, ((0, bp - batch), (0, 0)))
    lbl = jnp.pad(windows.astype(jnp.int32).T, ((0, 0), (0, bp - batch)))
    lbl = lbl[:, :, None]                       # (num_ctx, Bp, 1)

    # Grid: context slot outermost (megacore split lands on w -> disjoint
    # weight halves per TensorCore), vocab reduction innermost ("arbitrary").
    grid = (num_ctx, bp // tile_b, vp // tile_v)

    if vmem_limit_bytes is None:
        est = _vmem_estimate(tile_b, tile_v, ep, itemsize)
        vmem_limit_bytes = int(min(max(32 << 20, 2 * est), 48 << 20))

    kernel = functools.partial(
        _skipgram_loss_kernel, num_class=num_class, tile_v=tile_v,
        tile_b=tile_b, batch=batch, vpad=vp - num_class)

    per_row = pl.pallas_call(
        kernel,
        out_shape=jax.ShapeDtypeStruct((num_ctx, bp, 1), jnp.float32),
        grid_spec=pltpu.PrefetchScalarGridSpec(
            num_scalar_prefetch=0,
            grid=grid,
            in_specs=[
                pl.BlockSpec((tile_b, ep), lambda w, i, k: (i, 0)),
                pl.BlockSpec((1, tile_v, ep), lambda w, i, k: (w, k, 0)),
                pl.BlockSpec((1, tile_b, 1), lambda w, i, k: (w, i, 0)),
            ],
            out_specs=pl.BlockSpec((1, tile_b, 1), lambda w, i, k: (w, i, 0)),
            scratch_shapes=[pltpu.VMEM((tile_b, 1), jnp.float32)] * 3,
        ),
        compiler_params=pltpu.CompilerParams(
            dimension_semantics=("parallel", "parallel", "arbitrary"),
            vmem_limit_bytes=vmem_limit_bytes),
    )(emb, w3, lbl)

    # Dropout is identity in eval mode; loss is the sum of per-row losses.
    loss = jnp.sum(per_row)
    count = windows.size
    return loss, count


def _reference_forward(windows, centers, embedding_w, classifier_w, *,
                       window_size):
    """Pure-JAX f32 reference for validation."""
    num_class = embedding_w.shape[0]
    num_ctx = 2 * window_size
    batch = centers.shape[0]
    emb = embedding_w[centers]
    logits = jnp.dot(emb, classifier_w.T, precision=jax.lax.Precision.HIGHEST)
    logits = logits.reshape(batch * num_ctx, num_class)
    labels = windows.reshape(batch * num_ctx)
    lse = jax.nn.logsumexp(logits, axis=-1)
    lab = jnp.take_along_axis(logits, labels[:, None], axis=-1)[:, 0]
    return jnp.sum(lse - lab), windows.size


if __name__ == "__main__":
    # Small but non-trivial problem exercising batch tiling, vocab tiling
    # (online LSE over several tiles), last-tile vocab-pad masking, and
    # padding of V, E and B.
    VOCAB = 300        # padded to 384 (E-only tile) or 3 x 128 tiles
    EMB_DIM = 48       # padded to 128
    WINDOW = 2         # num_ctx = 4
    BATCH = 20         # padded to 24

    key = jax.random.PRNGKey(0)
    k_emb, k_cls, k_win, k_cen = jax.random.split(key, 4)

    embedding_w = jax.random.normal(k_emb, (VOCAB, EMB_DIM), jnp.float32)
    classifier_w = jax.random.normal(
        k_cls, (VOCAB * WINDOW * 2, EMB_DIM), jnp.float32) * 0.1
    windows = jax.random.randint(k_win, (BATCH, 2 * WINDOW), 0, VOCAB,
                                 dtype=jnp.int32)
    centers = jax.random.randint(k_cen, (BATCH,), 0, VOCAB, dtype=jnp.int32)

    ref_loss, ref_count = _reference_forward(
        windows, centers, embedding_w, classifier_w, window_size=WINDOW)

    # 1) f32 path with forced small tiles: exercises 3 vocab tiles (online LSE
    #    + masked last tile) and 3 batch tiles.  Tight tolerance.
    params_f32 = prepare_skipgram_params(
        embedding_w, classifier_w, WINDOW, tile_v=128,
        compute_dtype=jnp.float32)
    loss_f32, count = skipgram_forward(windows, centers, params_f32, tile_b=8)
    loss_f32 = jax.block_until_ready(loss_f32)
    assert count == ref_count
    assert jnp.allclose(loss_f32, ref_loss, rtol=1e-3, atol=1e-2), (
        loss_f32, ref_loss)

    # 2) Default path: bf16 streaming, tile_v chosen first, single batch tile.
    params_bf16 = prepare_skipgram_params(embedding_w, classifier_w, WINDOW)
    loss_bf16, count = skipgram_forward(windows, centers, params_bf16)
    loss_bf16 = jax.block_until_ready(loss_bf16)
    assert count == ref_count
    assert jnp.allclose(loss_bf16, ref_loss, rtol=5e-3, atol=0.5), (
        loss_bf16, ref_loss)

    print("KERNEL_OK")
</pallas_src>

<mosaic_0001>
module attributes {stable_mosaic.version = 11 : i64} {
  func.func @_skipgram_loss_kernel(%arg0: i32, %arg1: i32, %arg2: i32, %arg3: memref<8x128xf32, #tpu.memory_space<vmem>>, %arg4: memref<1x128x128xf32, #tpu.memory_space<vmem>>, %arg5: memref<1x8x1xi32, #tpu.memory_space<vmem>>, %arg6: memref<1x8x1xf32, #tpu.memory_space<vmem>>, %arg7: memref<8x1xf32, #tpu.memory_space<vmem>>, %arg8: memref<8x1xf32, #tpu.memory_space<vmem>>, %arg9: memref<8x1xf32, #tpu.memory_space<vmem>>) attributes {dimension_semantics = [#tpu.dimension_semantics<parallel>, #tpu.dimension_semantics<parallel>, #tpu.dimension_semantics<arbitrary>], iteration_bounds = array<i64: 4, 3, 3>, scalar_prefetch = 0 : i64, scratch_operands = 3 : i64, tpu.core_type = #tpu.core_type<tc>, window_params = [{transform_indices = @transform_0, window_bounds = array<i64: 8, 128>}, {transform_indices = @transform_1, window_bounds = array<i64: 1, 128, 128>}, {transform_indices = @transform_2, window_bounds = array<i64: 1, 8, 1>}, {transform_indices = @transform_3, window_bounds = array<i64: 1, 8, 1>}]} {
    %c0_i32 = arith.constant 0 : i32
    %0 = arith.cmpi eq, %arg2, %c0_i32 : i32
    %1 = arith.extui %0 : i1 to i32
    %c0_i32_0 = arith.constant 0 : i32
    %2 = arith.cmpi ne, %1, %c0_i32_0 : i32
    scf.if %2 {
      %cst_8 = arith.constant -1.000000e+30 : f32
      %17 = vector.broadcast %cst_8 : f32 to vector<8x1xf32>
      %c0_9 = arith.constant 0 : index
      %c0_10 = arith.constant 0 : index
      %18 = vector.load %arg7[%c0_9, %c0_10] : memref<8x1xf32, #tpu.memory_space<vmem>>, vector<8x1xf32>
      tpu.vector_store %arg7[%c0_9, %c0_10], %17 {strides = array<i32>} : memref<8x1xf32, #tpu.memory_space<vmem>>, vector<8x1xf32>,
      %cst_11 = arith.constant 0.000000e+00 : f32
      %19 = vector.broadcast %cst_11 : f32 to vector<8x1xf32>
      %c0_12 = arith.constant 0 : index
      %c0_13 = arith.constant 0 : index
      %20 = vector.load %arg8[%c0_12, %c0_13] : memref<8x1xf32, #tpu.memory_space<vmem>>, vector<8x1xf32>
      tpu.vector_store %arg8[%c0_12, %c0_13], %19 {strides = array<i32>} : memref<8x1xf32, #tpu.memory_space<vmem>>, vector<8x1xf32>,
      %cst_14 = arith.constant 0.000000e+00 : f32
      %21 = vector.broadcast %cst_14 : f32 to vector<8x1xf32>
      %c0_15 = arith.constant 0 : index
      %c0_16 = arith.constant 0 : index
      %22 = vector.load %arg9[%c0_15, %c0_16] : memref<8x1xf32, #tpu.memory_space<vmem>>, vector<8x1xf32>
      tpu.vector_store %arg9[%c0_15, %c0_16], %21 {strides = array<i32>} : memref<8x1xf32, #tpu.memory_space<vmem>>, vector<8x1xf32>,
    } else {
    }
    %c0 = arith.constant 0 : index
    %c0_1 = arith.constant 0 : index
    %3 = vector.load %arg3[%c0, %c0_1] : memref<8x128xf32, #tpu.memory_space<vmem>>, vector<8x128xf32>
    %c0_2 = arith.constant 0 : index
    %c0_3 = arith.constant 0 : index
    %c0_4 = arith.constant 0 : index
    %4 = vector.load %arg4[%c0_2, %c0_3, %c0_4] : memref<1x128x128xf32, #tpu.memory_space<vmem>>, vector<1x128x128xf32>
    %5 = vector.shape_cast %4 : vector<1x128x128xf32> to vector<128x128xf32>
    %cst = arith.constant dense<0.000000e+00> : vector<8x128xf32>
    %6 = tpu.matmul %3, %5, %cst {dimension_numbers = #tpu.dot_dimension_numbers<[1], [1], [0], [0], [0, 0, 1, 0], [], []>} : vector<8x128xf32>, vector<128x128xf32>, vector<8x128xf32> -> vector<8x128xf32>
    %7 = tpu.iota {dimensions = array<i32: 1>} : vector<8x128xi32>
    %c128_i32 = arith.constant 128 : i32
    %8 = arith.muli %arg2, %c128_i32 : i32
    %9 = vector.broadcast %8 : i32 to vector<8x128xi32>
    %10 = arith.addi %7, %9 : vector<8x128xi32>
    %c2_i32 = arith.constant 2 : i32
    %11 = arith.cmpi slt, %arg2, %c2_i32 : i32
    %12 = arith.extui %11 : i1 to i32
    %c0_i32_5 = arith.constant 0 : i32
    %13 = arith.cmpi ne, %12, %c0_i32_5 : i32
    scf.if %13 {
      %c0_8 = arith.constant 0 : index
      %c0_9 = arith.constant 0 : index
      %17 = vector.load %arg7[%c0_8, %c0_9] : memref<8x1xf32, #tpu.memory_space<vmem>>, vector<8x1xf32>
      %cst_10 = arith.constant dense<0xFF800000> : vector<8xf32>
      %18 = vector.multi_reduction <maximumf>, %6, %cst_10 [1] : vector<8x128xf32> to vector<8xf32>
      %19 = vector.shape_cast %18 : vector<8xf32> to vector<8x1xf32>
      %20 = arith.maximumf %17, %19 : vector<8x1xf32>
      %c0_11 = arith.constant 0 : index
      %c0_12 = arith.constant 0 : index
      %21 = vector.load %arg8[%c0_11, %c0_12] : memref<8x1xf32, #tpu.memory_space<vmem>>, vector<8x1xf32>
      %22 = arith.subf %17, %20 : vector<8x1xf32>
      %23 = math.exp %22 : vector<8x1xf32>
      %24 = arith.mulf %21, %23 : vector<8x1xf32>
      %25 = vector.broadcast %20 : vector<8x1xf32> to vector<8x128xf32>
      %26 = arith.subf %6, %25 : vector<8x128xf32>
      %27 = math.exp %26 : vector<8x128xf32>
      %cst_13 = arith.constant dense<0.000000e+00> : vector<8xf32>
      %28 = vector.multi_reduction <add>, %27, %cst_13 [1] : vector<8x128xf32> to vector<8xf32>
      %29 = vector.shape_cast %28 : vector<8xf32> to vector<8x1xf32>
      %30 = arith.addf %24, %29 : vector<8x1xf32>
      %c0_14 = arith.constant 0 : index
      %c0_15 = arith.constant 0 : index
      %31 = vector.load %arg8[%c0_14, %c0_15] : memref<8x1xf32, #tpu.memory_space<vmem>>, vector<8x1xf32>
      tpu.vector_store %arg8[%c0_14, %c0_15], %30 {strides = array<i32>} : memref<8x1xf32, #tpu.memory_space<vmem>>, vector<8x1xf32>,
      %c0_16 = arith.constant 0 : index
      %c0_17 = arith.constant 0 : index
      %32 = vector.load %arg7[%c0_16, %c0_17] : memref<8x1xf32, #tpu.memory_space<vmem>>, vector<8x1xf32>
      tpu.vector_store %arg7[%c0_16, %c0_17], %20 {strides = array<i32>} : memref<8x1xf32, #tpu.memory_space<vmem>>, vector<8x1xf32>,
      %c0_18 = arith.constant 0 : index
      %c0_19 = arith.constant 0 : index
      %33 = vector.load %arg9[%c0_18, %c0_19] : memref<8x1xf32, #tpu.memory_space<vmem>>, vector<8x1xf32>
      %c0_20 = arith.constant 0 : index
      %c0_21 = arith.constant 0 : index
      %c0_22 = arith.constant 0 : index
      %34 = vector.load %arg5[%c0_20, %c0_21, %c0_22] : memref<1x8x1xi32, #tpu.memory_space<vmem>>, vector<1x8x1xi32>
      %35 = vector.shape_cast %34 : vector<1x8x1xi32> to vector<8x1xi32>
      %36 = vector.broadcast %35 : vector<8x1xi32> to vector<8x128xi32>
      %37 = arith.cmpi eq, %10, %36 : vector<8x128xi32>
      %cst_23 = arith.constant 0.000000e+00 : f32
      %38 = vector.broadcast %cst_23 : f32 to vector<8x128xf32>
      %39 = arith.select %37, %6, %38 : vector<8x128xi1>, vector<8x128xf32>
      %cst_24 = arith.constant dense<0.000000e+00> : vector<8xf32>
      %40 = vector.multi_reduction <add>, %39, %cst_24 [1] : vector<8x128xf32> to vector<8xf32>
      %41 = vector.shape_cast %40 : vector<8xf32> to vector<8x1xf32>
      %42 = arith.addf %33, %41 : vector<8x1xf32>
      %c0_25 = arith.constant 0 : index
      %c0_26 = arith.constant 0 : index
      %43 = vector.load %arg9[%c0_25, %c0_26] : memref<8x1xf32, #tpu.memory_space<vmem>>, vector<8x1xf32>
      tpu.vector_store %arg9[%c0_25, %c0_26], %42 {strides = array<i32>} : memref<8x1xf32, #tpu.memory_space<vmem>>, vector<8x1xf32>,
    } else {
    }
    %c2_i32_6 = arith.constant 2 : i32
    %14 = arith.cmpi eq, %arg2, %c2_i32_6 : i32
    %15 = arith.extui %14 : i1 to i32
    %c0_i32_7 = arith.constant 0 : i32
    %16 = arith.cmpi ne, %15, %c0_i32_7 : i32
    scf.if %16 {
      %c300_i32 = arith.constant 300 : i32
      %17 = vector.broadcast %c300_i32 : i32 to vector<8x128xi32>
      %18 = arith.cmpi slt, %10, %17 : vector<8x128xi32>
      %cst_8 = arith.constant -1.000000e+30 : f32
      %19 = vector.broadcast %cst_8 : f32 to vector<8x128xf32>
      %20 = arith.select %18, %6, %19 : vector<8x128xi1>, vector<8x128xf32>
      %c0_9 = arith.constant 0 : index
      %c0_10 = arith.constant 0 : index
      %21 = vector.load %arg7[%c0_9, %c0_10] : memref<8x1xf32, #tpu.memory_space<vmem>>, vector<8x1xf32>
      %cst_11 = arith.constant dense<0xFF800000> : vector<8xf32>
      %22 = vector.multi_reduction <maximumf>, %20, %cst_11 [1] : vector<8x128xf32> to vector<8xf32>
      %23 = vector.shape_cast %22 : vector<8xf32> to vector<8x1xf32>
      %24 = arith.maximumf %21, %23 : vector<8x1xf32>
      %c0_12 = arith.constant 0 : index
      %c0_13 = arith.constant 0 : index
      %25 = vector.load %arg8[%c0_12, %c0_13] : memref<8x1xf32, #tpu.memory_space<vmem>>, vector<8x1xf32>
      %26 = arith.subf %21, %24 : vector<8x1xf32>
      %27 = math.exp %26 : vector<8x1xf32>
      %28 = arith.mulf %25, %27 : vector<8x1xf32>
      %29 = vector.broadcast %24 : vector<8x1xf32> to vector<8x128xf32>
      %30 = arith.subf %20, %29 : vector<8x128xf32>
      %31 = math.exp %30 : vector<8x128xf32>
      %cst_14 = arith.constant dense<0.000000e+00> : vector<8xf32>
      %32 = vector.multi_reduction <add>, %31, %cst_14 [1] : vector<8x128xf32> to vector<8xf32>
      %33 = vector.shape_cast %32 : vector<8xf32> to vector<8x1xf32>
      %34 = arith.addf %28, %33 : vector<8x1xf32>
      %c0_15 = arith.constant 0 : index
      %c0_16 = arith.constant 0 : index
      %35 = vector.load %arg8[%c0_15, %c0_16] : memref<8x1xf32, #tpu.memory_space<vmem>>, vector<8x1xf32>
      tpu.vector_store %arg8[%c0_15, %c0_16], %34 {strides = array<i32>} : memref<8x1xf32, #tpu.memory_space<vmem>>, vector<8x1xf32>,
      %c0_17 = arith.constant 0 : index
      %c0_18 = arith.constant 0 : index
      %36 = vector.load %arg7[%c0_17, %c0_18] : memref<8x1xf32, #tpu.memory_space<vmem>>, vector<8x1xf32>
      tpu.vector_store %arg7[%c0_17, %c0_18], %24 {strides = array<i32>} : memref<8x1xf32, #tpu.memory_space<vmem>>, vector<8x1xf32>,
      %c0_19 = arith.constant 0 : index
      %c0_20 = arith.constant 0 : index
      %37 = vector.load %arg9[%c0_19, %c0_20] : memref<8x1xf32, #tpu.memory_space<vmem>>, vector<8x1xf32>
      %c0_21 = arith.constant 0 : index
      %c0_22 = arith.constant 0 : index
      %c0_23 = arith.constant 0 : index
      %38 = vector.load %arg5[%c0_21, %c0_22, %c0_23] : memref<1x8x1xi32, #tpu.memory_space<vmem>>, vector<1x8x1xi32>
      %39 = vector.shape_cast %38 : vector<1x8x1xi32> to vector<8x1xi32>
      %40 = vector.broadcast %39 : vector<8x1xi32> to vector<8x128xi32>
      %41 = arith.cmpi eq, %10, %40 : vector<8x128xi32>
      %cst_24 = arith.constant 0.000000e+00 : f32
      %42 = vector.broadcast %cst_24 : f32 to vector<8x128xf32>
      %43 = arith.select %41, %20, %42 : vector<8x128xi1>, vector<8x128xf32>
      %cst_25 = arith.constant dense<0.000000e+00> : vector<8xf32>
      %44 = vector.multi_reduction <add>, %43, %cst_25 [1] : vector<8x128xf32> to vector<8xf32>
      %45 = vector.shape_cast %44 : vector<8xf32> to vector<8x1xf32>
      %46 = arith.addf %37, %45 : vector<8x1xf32>
      %c0_26 = arith.constant 0 : index
      %c0_27 = arith.constant 0 : index
      %47 = vector.load %arg9[%c0_26, %c0_27] : memref<8x1xf32, #tpu.memory_space<vmem>>, vector<8x1xf32>
      tpu.vector_store %arg9[%c0_26, %c0_27], %46 {strides = array<i32>} : memref<8x1xf32, #tpu.memory_space<vmem>>, vector<8x1xf32>,
      %48 = tpu.iota {dimensions = array<i32: 0>} : vector<8x1xi32>
      %c8_i32 = arith.constant 8 : i32
      %49 = arith.muli %arg1, %c8_i32 : i32
      %50 = vector.broadcast %49 : i32 to vector<8x1xi32>
      %51 = arith.addi %48, %50 : vector<8x1xi32>
      %c0_28 = arith.constant 0 : index
      %c0_29 = arith.constant 0 : index
      %52 = vector.load %arg7[%c0_28, %c0_29] : memref<8x1xf32, #tpu.memory_space<vmem>>, vector<8x1xf32>
      %c0_30 = arith.constant 0 : index
      %c0_31 = arith.constant 0 : index
      %53 = vector.load %arg8[%c0_30, %c0_31] : memref<8x1xf32, #tpu.memory_space<vmem>>, vector<8x1xf32>
      %54 = math.log %53 : vector<8x1xf32>
      %55 = arith.addf %52, %54 : vector<8x1xf32>
      %c0_32 = arith.constant 0 : index
      %c0_33 = arith.constant 0 : index
      %56 = vector.load %arg9[%c0_32, %c0_33] : memref<8x1xf32, #tpu.memory_space<vmem>>, vector<8x1xf32>
      %57 = arith.subf %55, %56 : vector<8x1xf32>
      %c20_i32 = arith.constant 20 : i32
      %58 = vector.broadcast %c20_i32 : i32 to vector<8x1xi32>
      %59 = arith.cmpi slt, %51, %58 : vector<8x1xi32>
      %cst_34 = arith.constant 0.000000e+00 : f32
      %60 = vector.broadcast %cst_34 : f32 to vector<8x1xf32>
      %61 = arith.select %59, %57, %60 : vector<8x1xi1>, vector<8x1xf32>
      %c0_35 = arith.constant 0 : index
      %c0_36 = arith.constant 0 : index
      %c0_37 = arith.constant 0 : index
      %62 = vector.load %arg6[%c0_35, %c0_36, %c0_37] : memref<1x8x1xf32, #tpu.memory_space<vmem>>, vector<1x8x1xf32>
      %63 = vector.shape_cast %62 : vector<1x8x1xf32> to vector<8x1xf32>
      %64 = vector.shape_cast %61 : vector<8x1xf32> to vector<1x8x1xf32>
      tpu.vector_store %arg6[%c0_35, %c0_36, %c0_37], %64 {strides = array<i32>} : memref<1x8x1xf32, #tpu.memory_space<vmem>>, vector<1x8x1xf32>,
    } else {
    }
    return
  }
  func.func @transform_0(%arg0: i32, %arg1: i32, %arg2: i32) -> (i32, i32) {
    %c0_i32 = arith.constant 0 : i32
    %c0_i32_0 = arith.constant 0 : i32
    return %arg1, %c0_i32 : i32, i32
  }
  func.func @transform_1(%arg0: i32, %arg1: i32, %arg2: i32) -> (i32, i32, i32) {
    %c0_i32 = arith.constant 0 : i32
    %c0_i32_0 = arith.constant 0 : i32
    return %arg0, %arg2, %c0_i32 : i32, i32, i32
  }
  func.func @transform_2(%arg0: i32, %arg1: i32, %arg2: i32) -> (i32, i32, i32) {
    %c0_i32 = arith.constant 0 : i32
    %c0_i32_0 = arith.constant 0 : i32
    return %arg0, %arg1, %c0_i32 : i32, i32, i32
  }
  func.func @transform_3(%arg0: i32, %arg1: i32, %arg2: i32) -> (i32, i32, i32) {
    %c0_i32 = arith.constant 0 : i32
    %c0_i32_0 = arith.constant 0 : i32
    return %arg0, %arg1, %c0_i32 : i32, i32, i32
  }
}

</mosaic_0001>

<llo_original>
// kernel: tpu_custom_call.1
$region0: #{tpu_custom_call.1}
  #allocation0 [shape = 'u32[]', space=smem, size = 0x4, offset = 0x4, fixed_abs, tag = 'smem constant byte address 0x4 - core index']
  #allocation1 [shape = 'u32[144,128]{1,0:T(1,128)}', space=vmem, size = 0x12000, scoped, tag = 'internal scratch']
  #allocation2 [shape = 'f32[8,1]{1,0:T(8,128)}', space=vmem, size = 0x1000, scoped, tag = 'scratch operand']
  #allocation3 [shape = 'f32[8,1]{1,0:T(8,128)}', space=vmem, size = 0x1000, scoped, tag = 'scratch operand']
  #allocation4 [shape = 'f32[8,1]{1,0:T(8,128)}', space=vmem, size = 0x1000, scoped, tag = 'scratch operand']
  %s0 = inlined_call_operand.vmem [shape: f32[24,128], index: 0, kind: input, shape index: {}]
  %s1 = inlined_call_operand.hbm [shape: f32[4,384,128], index: 1, kind: input, shape index: {}]
  %s2 = inlined_call_operand.vmem [shape: s32[4,24,1], index: 2, kind: input, shape index: {}]
  %s3 = inlined_call_operand.vmem [shape: f32[4,24,1], index: 3, kind: output, shape index: {}]
  %s4 = sld [smem:[#allocation0]]
  $region61: #{tpu_custom_call.1} parent=0
    _
  %s6 = ssub.s32 1, %s4
  %s7 = scalar_select 0, %s6, %s4
  $region1: #{tpu_custom_call.1} parent=0
    #allocation5 [shape = 'u8[131072]{0}', space=vmem, size = 0x20000, scoped, tag = 'input window, operand 1']
    #allocation6 [shape = 's32[2]{0}', space=sflag, size = 0x8, scoped, tag = 'scoped memory for tpu_custom_call.1']
    %8 = vsyncpa [#allocation6], 0
    %s9 = scalar_lea.sflag [#allocation6], 1
    %10 = vsyncpa %s9, 0
    loop: start=0, step=1, limit=38
    $region2: #{tpu_custom_call.1} parent=1 // loop_pre_header
      _
    $region3: #{tpu_custom_call.1} parent=1 // loop_header
      %s12 = sphi 0, %s16
      %p13 = scmp.ge.s32.totalorder %s12, 38
      %s19 = sphi 0, %s38
      %s20 = sphi 0, %s34
      %s21 = sphi 0, %s30
      %s22 = sphi 0, %s19
      %s23 = sphi 0, %s20
      %s24 = sphi 0, %s21
      %s25 = sphi 0, %s22
      %s26 = sphi 0, %s23
      %s27 = sphi 0, %s24
      %s41 = sphi 0, %s43
      %s44 = sphi 0, %s41
      %s45 = sphi 0, %s44
      %s61 = sphi 0, %s45
      %s69 = sphi 0, %s71
      %s72 = sphi 0, %s69
      %s73 = sphi 0, %s72
      %s89 = sphi 0, %s73
      %s97 = sphi 0, %s99
      %s100 = sphi 0, %s97
      %s101 = sphi 0, %s100
      %s117 = sphi 0, %s101
      %s125 = sphi 0, %s127
      %s128 = sphi 0, %s125
      %s129 = sphi 0, %s128
      %s145 = sphi 0, %s129
    $region4: #{tpu_custom_call.1} parent=1 // loop_header_branch
      %15 = sbr.rel (%p13) target = $region8
    $region5: #{tpu_custom_call.1} parent=1 // loop_body
      %s17 = ssub.s32 %s12, 1
      %s18 = ssub.s32 %s12, 2
      %s28 = sadd.s32 1, %s21
      %p29 = scmp.ge.s32.totalorder %s28, 3
      %s30 = scalar_select %p29, 0, %s28
      %s31 = sadd.s32 1, %s20
      %s32 = scalar_select %p29, %s31, %s20
      %p33 = scmp.ge.s32.totalorder %s32, 3
      %s34 = scalar_select %p33, 0, %s32
      %s35 = sadd.s32 1, %s19
      %s36 = scalar_select %p33, %s35, %s19
      %p37 = scmp.ge.s32.totalorder %s36, 4
      %s38 = scalar_select %p37, 0, %s36
      %s39 = ssub.s32 %s20, %s34
      %p40 = scmp.eq.s32.totalorder %s39, 0
      %s42 = sadd.s32 %s41, 1
      %s43 = scalar_select %p40, %s41, %s42
      %p46 = pneg %p40
      %p47 = scmp.eq.s32.totalorder %s12, 35
      %p48 = por %p46, %p47
      %p49 = scmp.ne.s32.totalorder %s41, %s44
      %p50 = scmp.eq.s32.totalorder %s12, 0
      %p51 = por %p49, %p50
      %p52 = scmp.ne.s32.totalorder %s41, %s44
      %p53 = scmp.eq.s32.totalorder %s17, 35
      %p54 = por %p52, %p53
      %p55 = scmp.ne.s32.totalorder %s44, %s45
      %p56 = scmp.eq.s32.totalorder %s17, 0
      %p57 = por %p55, %p56
      %p58 = scmp.ne.s32.totalorder %s44, %s45
      %p59 = scmp.eq.s32.totalorder %s18, 35
      %p60 = por %p58, %p59
      %p62 = scmp.ne.s32.totalorder %s45, %s61
      %p63 = scmp.eq.s32.totalorder %s18, 0
      %p64 = por %p62, %p63
      %s65 = ssub.s32 %s19, %s38
      %s66 = ssub.s32 %s21, %s30
      %s67 = sor.u32 %s65, %s66
      %p68 = scmp.eq.s32.totalorder %s67, 0
      %s70 = sadd.s32 %s69, 1
      %s71 = scalar_select %p68, %s69, %s70
      %p74 = pneg %p68
      %p75 = scmp.eq.s32.totalorder %s12, 35
      %p76 = por %p74, %p75
      %p77 = scmp.ne.s32.totalorder %s69, %s72
      %p78 = scmp.eq.s32.totalorder %s12, 0
      %p79 = por %p77, %p78
      %p80 = scmp.ne.s32.totalorder %s69, %s72
      %p81 = scmp.eq.s32.totalorder %s17, 35
      %p82 = por %p80, %p81
      %p83 = scmp.ne.s32.totalorder %s72, %s73
      %p84 = scmp.eq.s32.totalorder %s17, 0
      %p85 = por %p83, %p84
      %p86 = scmp.ne.s32.totalorder %s72, %s73
      %p87 = scmp.eq.s32.totalorder %s18, 35
      %p88 = por %p86, %p87
      %p90 = scmp.ne.s32.totalorder %s73, %s89
      %p91 = scmp.eq.s32.totalorder %s18, 0
      %p92 = por %p90, %p91
      %s93 = ssub.s32 %s19, %s38
      %s94 = ssub.s32 %s20, %s34
      %s95 = sor.u32 %s93, %s94
      %p96 = scmp.eq.s32.totalorder %s95, 0
      %s98 = sadd.s32 %s97, 1
      %s99 = scalar_select %p96, %s97, %s98
      %p102 = pneg %p96
      %p103 = scmp.eq.s32.totalorder %s12, 35
      %p104 = por %p102, %p103
      %p105 = scmp.ne.s32.totalorder %s97, %s100
      %p106 = scmp.eq.s32.totalorder %s12, 0
      %p107 = por %p105, %p106
      %p108 = scmp.ne.s32.totalorder %s97, %s100
      %p109 = scmp.eq.s32.totalorder %s17, 35
      %p110 = por %p108, %p109
      %p111 = scmp.ne.s32.totalorder %s100, %s101
      %p112 = scmp.eq.s32.totalorder %s17, 0
      %p113 = por %p111, %p112
      %p114 = scmp.ne.s32.totalorder %s100, %s101
      %p115 = scmp.eq.s32.totalorder %s18, 35
      %p116 = por %p114, %p115
      %p118 = scmp.ne.s32.totalorder %s101, %s117
      %p119 = scmp.eq.s32.totalorder %s18, 0
      %p120 = por %p118, %p119
      %s121 = ssub.s32 %s19, %s38
      %s122 = ssub.s32 %s20, %s34
      %s123 = sor.u32 %s121, %s122
      %p124 = scmp.eq.s32.totalorder %s123, 0
      %s126 = sadd.s32 %s125, 1
      %s127 = scalar_select %p124, %s125, %s126
      %p130 = pneg %p124
      %p131 = scmp.eq.s32.totalorder %s12, 35
      %p132 = por %p130, %p131
      %p133 = scmp.ne.s32.totalorder %s125, %s128
      %p134 = scmp.eq.s32.totalorder %s12, 0
      %p135 = por %p133, %p134
      %p136 = scmp.ne.s32.totalorder %s125, %s128
      %p137 = scmp.eq.s32.totalorder %s17, 35
      %p138 = por %p136, %p137
      %p139 = scmp.ne.s32.totalorder %s128, %s129
      %p140 = scmp.eq.s32.totalorder %s17, 0
      %p141 = por %p139, %p140
      %p142 = scmp.ne.s32.totalorder %s128, %s129
      %p143 = scmp.eq.s32.totalorder %s18, 35
      %p144 = por %p142, %p143
      %p146 = scmp.ne.s32.totalorder %s129, %s145
      %p147 = scmp.eq.s32.totalorder %s18, 0
      %p148 = por %p146, %p147
      %p149 = scmp.le.s32.totalorder 1, %s12
      %p150 = scmp.lt.s32.totalorder %s12, 37
      %p151 = pnand %p149, %p150
      %p152 = pneg %p151
      // Predicated region
      $region9: #{tpu_custom_call.1} parent=5 // pred_check
        _
      $region10: #{tpu_custom_call.1} parent=5 // pred_check_branch
        %154 = sbr.rel (%p151) target = $region12
      $region11: #{tpu_custom_call.1} parent=5 // pred_region
        %s155 = ssub.s32 %s12, 1
      $region12: #{tpu_custom_call.1} parent=5 // pred_fallthru
        _
      %p156 = scmp.lt.s32.totalorder %s12, 36
      // Predicated region
      $region13: #{tpu_custom_call.1} parent=5 // pred_check
        %p157 = pneg %p156
      $region14: #{tpu_custom_call.1} parent=5 // pred_check_branch
        %159 = sbr.rel (%p157) target = $region16
      $region15: #{tpu_custom_call.1} parent=5 // pred_region
        // Predicated region
        $region17: #{tpu_custom_call.1} parent=15 // pred_check
          %p160 = pneg %p51
        $region18: #{tpu_custom_call.1} parent=15 // pred_check_branch
          %162 = sbr.rel (%p160) target = $region20
        $region19: #{tpu_custom_call.1} parent=15 // pred_region
          %p163 = scmp.lt.s32.totalorder %s20, 2
          %s164 = scalar_select %p163, %s20, 2
          %s165 = smul.addr %s164, 8
          %s166 = scalar_lea.vmem %s0, %s165
        $region20: #{tpu_custom_call.1} parent=15 // pred_fallthru
          _
        // Predicated region
        $region21: #{tpu_custom_call.1} parent=15 // pred_check
          %p167 = pneg %p79
        $region22: #{tpu_custom_call.1} parent=15 // pred_check_branch
          %169 = sbr.rel (%p167) target = $region24
        $region23: #{tpu_custom_call.1} parent=15 // pred_region
          %s170 = sand.u32 %s69, 1
          %s171 = scalar_lea.sflag [#allocation6], %s170
          %s172 = sand.u32 %s69, 1
          %s173 = smul.addr %s172, 128
          %s174 = scalar_lea.vmem [#allocation5], %s173
          %s175 = smul.u32 16, %s21
          %s177 = ssub.s32 2048, 2048
          %178 = vsyncadd %s171, %s177
          %s179 = smul.addr %s19, 48
          %s180 = sadd.s32 %s175, %s179
          %s181 = smul.addr %s180, 128
          %s182 = scalar_lea.hbm %s1, %s181
          %s183 = sshll.u32 %s174, 4
          %s184 = int_to_ptr.vmem [resolvable:$true] %s183
          %189 = dma.hbm_to_vmem [thread:$0]  %s182, 2048, %s184, %s171, 128, 128, 8
        $region24: #{tpu_custom_call.1} parent=15 // pred_fallthru
          _
        // Predicated region
        $region25: #{tpu_custom_call.1} parent=15 // pred_check
          %p190 = pneg %p107
        $region26: #{tpu_custom_call.1} parent=15 // pred_check_branch
          %192 = sbr.rel (%p190) target = $region28
        $region27: #{tpu_custom_call.1} parent=15 // pred_region
          %p193 = scmp.lt.s32.totalorder %s19, 3
          %s194 = scalar_select %p193, %s19, 3
          %p195 = scmp.lt.s32.totalorder %s20, 2
          %s196 = scalar_select %p195, %s20, 2
          %s197 = smul.addr %s194, 3
          %s198 = sadd.s32 %s196, %s197
          %s199 = smul.addr %s198, 8
          %s200 = scalar_lea.vmem %s2, %s199
        $region28: #{tpu_custom_call.1} parent=15 // pred_fallthru
          _
      $region16: #{tpu_custom_call.1} parent=5 // pred_fallthru
        _
      %p201 = scmp.le.s32.totalorder 1, %s12
      %p202 = scmp.lt.s32.totalorder %s12, 37
      %p203 = pnand %p201, %p202
      %p204 = pneg %p203
      // Predicated region
      $region29: #{tpu_custom_call.1} parent=5 // pred_check
        _
      $region30: #{tpu_custom_call.1} parent=5 // pred_check_branch
        %206 = sbr.rel (%p203) target = $region32
      $region31: #{tpu_custom_call.1} parent=5 // pred_region
        %s207 = ssub.s32 %s12, 1
        %s208 = sand.u32 %s72, 1
        %s209 = scalar_lea.sflag [#allocation6], %s208
        %s210 = sand.u32 %s72, 1
        %s211 = smul.addr %s210, 128
        %s212 = scalar_lea.vmem [#allocation5], %s211
        // Predicated region
        $region33: #{tpu_custom_call.1} parent=31 // pred_check
          %p213 = pneg %p85
        $region34: #{tpu_custom_call.1} parent=31 // pred_check_branch
          %215 = sbr.rel (%p213) target = $region36
        $region35: #{tpu_custom_call.1} parent=31 // pred_region
          %216 = dma.done %s209, 2048
        $region36: #{tpu_custom_call.1} parent=31 // pred_fallthru
          _
        %p217 = scmp.lt.s32.totalorder %s23, 2
        %s218 = scalar_select %p217, %s23, 2
        %s219 = smul.addr %s218, 8
        %s220 = scalar_lea.vmem %s0, %s219
        %p221 = pneg %p57
        %p222 = pneg %p54
        %s223 = sand.u32 %s72, 1
        %s224 = scalar_lea.sflag [#allocation6], %s223
        %s225 = sand.u32 %s72, 1
        %s226 = smul.addr %s225, 128
        %s227 = scalar_lea.vmem [#allocation5], %s226
        %p228 = pneg %p85
        %p229 = pneg %p82
        %p230 = scmp.lt.s32.totalorder %s22, 3
        %s231 = scalar_select %p230, %s22, 3
        %p232 = scmp.lt.s32.totalorder %s23, 2
        %s233 = scalar_select %p232, %s23, 2
        %s234 = smul.addr %s231, 3
        %s235 = sadd.s32 %s233, %s234
        %s236 = smul.addr %s235, 8
        %s237 = scalar_lea.vmem %s2, %s236
        %p238 = pneg %p113
        %p239 = pneg %p110
        %p240 = pneg %p141
        %p241 = pneg %p138
        %p242 = scmp.lt.s32.totalorder %s22, 3
        %s243 = scalar_select %p242, %s22, 3
        %p244 = scmp.lt.s32.totalorder %s23, 2
        %s245 = scalar_select %p244, %s23, 2
        %s246 = smul.addr %s243, 3
        %s247 = sadd.s32 %s245, %s246
        %s248 = smul.addr %s247, 8
        %s249 = scalar_lea.vmem %s3, %s248
        %p250 = scmp.lt.s32.totalorder %s23, 2
        %s251 = scalar_select %p250, %s23, 2
        %s252 = smul.addr %s251, 8
        %s253 = scalar_lea.vmem %s0, %s252
        %s254 = smul.u32 16, %s24
        %p255 = scmp.lt.s32.totalorder %s22, 3
        %s256 = scalar_select %p255, %s22, 3
        %p257 = scmp.lt.s32.totalorder %s23, 2
        %s258 = scalar_select %p257, %s23, 2
        %s259 = smul.addr %s256, 3
        %s260 = sadd.s32 %s258, %s259
        %s261 = smul.addr %s260, 8
        %s262 = scalar_lea.vmem %s2, %s261
        %p263 = scmp.lt.s32.totalorder %s22, 3
        %s264 = scalar_select %p263, %s22, 3
        %p265 = scmp.lt.s32.totalorder %s23, 2
        %s266 = scalar_select %p265, %s23, 2
        %s267 = smul.addr %s264, 3
        %s268 = sadd.s32 %s266, %s267
        %s269 = smul.addr %s268, 8
        %s270 = scalar_lea.vmem %s3, %s269
        %p271 = scmp.eq.s32.totalorder %s24, 0
        // Predicated region
        $region37: #{tpu_custom_call.1} parent=31 // pred_check
          %p272 = pneg %p271
        $region38: #{tpu_custom_call.1} parent=31 // pred_check_branch
          %274 = sbr.rel (%p272) target = $region40
        $region39: #{tpu_custom_call.1} parent=31 // pred_region
          %vm275 = vcmask 7168
          %276 = vst.msk [vmem:[#allocation2] sm:$0xff] %vm275, -1e+30
          %277 = vst.msk [vmem:[#allocation3] sm:$0xff] %vm275, 0.0
          %278 = vst.msk [vmem:[#allocation4] sm:$0xff] %vm275, 0.0
        $region40: #{tpu_custom_call.1} parent=31 // pred_fallthru
          _
        %v279 = vld [vmem:[%s253] sm:$0xff]
        %v280 = vld [vmem:[%s212] sm:$0xff]
        %v281 = vld [vmem:[%s212 + $0x8] sm:$0xff]
        %v282 = vld [vmem:[%s212 + $0x10] sm:$0xff]
        %v283 = vld [vmem:[%s212 + $0x18] sm:$0xff]
        %v284 = vld [vmem:[%s212 + $0x20] sm:$0xff]
        %v285 = vld [vmem:[%s212 + $0x28] sm:$0xff]
        %v286 = vld [vmem:[%s212 + $0x30] sm:$0xff]
        %v287 = vld [vmem:[%s212 + $0x38] sm:$0xff]
        %v288 = vld [vmem:[%s212 + $0x40] sm:$0xff]
        %v289 = vld [vmem:[%s212 + $0x48] sm:$0xff]
        %v290 = vld [vmem:[%s212 + $0x50] sm:$0xff]
        %v291 = vld [vmem:[%s212 + $0x58] sm:$0xff]
        %v292 = vld [vmem:[%s212 + $0x60] sm:$0xff]
        %v293 = vld [vmem:[%s212 + $0x68] sm:$0xff]
        %v294 = vld [vmem:[%s212 + $0x70] sm:$0xff]
        %v295 = vld [vmem:[%s212 + $0x78] sm:$0xff]
        %296 = vmatprep.subr.mxu0 0.0
        %297 = vmatpush1.xpose.msra.mxu0 %v280
        %298 = vmatprep.subr.mxu0 0.0
        %299 = vmatpush1.xpose.msra.mxu0 %v281
        %300 = vmatprep.subr.mxu0 0.0
        %301 = vmatpush1.xpose.msra.mxu0 %v282
        %302 = vmatprep.subr.mxu0 0.0
        %303 = vmatpush1.xpose.msra.mxu0 %v283
        %304 = vmatprep.subr.mxu0 0.0
        %305 = vmatpush1.xpose.msra.mxu0 %v284
        %306 = vmatprep.subr.mxu0 0.0
        %307 = vmatpush1.xpose.msra.mxu0 %v285
        %308 = vmatprep.subr.mxu0 0.0
        %309 = vmatpush1.xpose.msra.mxu0 %v286
        %310 = vmatprep.subr.mxu0 0.0
        %311 = vmatpush1.xpose.msra.mxu0 %v287
        %312 = vmatprep.subr.mxu0 0.0
        %313 = vmatpush1.xpose.msra.mxu0 %v288
        %314 = vmatprep.subr.mxu0 0.0
        %315 = vmatpush1.xpose.msra.mxu0 %v289
        %316 = vmatprep.subr.mxu0 0.0
        %317 = vmatpush1.xpose.msra.mxu0 %v290
        %318 = vmatprep.subr.mxu0 0.0
        %319 = vmatpush1.xpose.msra.mxu0 %v291
        %320 = vmatprep.subr.mxu0 0.0
        %321 = vmatpush1.xpose.msra.mxu0 %v292
        %322 = vmatprep.subr.mxu0 0.0
        %323 = vmatpush1.xpose.msra.mxu0 %v293
        %324 = vmatprep.subr.mxu0 0.0
        %325 = vmatpush1.xpose.msra.mxu0 %v294
        %326 = vmatprep.subr.mxu0 0.0
        %327 = vmatpush1.xpose.msra.mxu0 %v295
        %328 = vmatprep.subr.mxu0 0.0
        %329 = vmatpush1.xpose.msra.mxu0 0.0
        %330 = vmatprep.subr.mxu0 0.0
        %331 = vmatpush1.xpose.msra.mxu0 0.0
        %332 = vmatprep.subr.mxu0 0.0
        %333 = vmatpush1.xpose.msra.mxu0 0.0
        %334 = vmatprep.subr.mxu0 0.0
        %335 = vmatpush1.xpose.msra.mxu0 0.0
        %336 = vmatprep.subr.mxu0 0.0
        %337 = vmatpush1.xpose.msra.mxu0 0.0
        %338 = vmatprep.subr.mxu0 0.0
        %339 = vmatpush1.xpose.msra.mxu0 0.0
        %340 = vmatprep.subr.mxu0 0.0
        %341 = vmatpush1.xpose.msra.mxu0 0.0
        %342 = vmatprep.subr.mxu0 0.0
        %343 = vmatpush1.xpose.msra.mxu0 0.0
        %344 = vmatprep.subr.mxu0 0.0
        %345 = vmatpush1.xpose.msra.mxu0 0.0
        %346 = vmatprep.subr.mxu0 0.0
        %347 = vmatpush1.xpose.msra.mxu0 0.0
        %348 = vmatprep.subr.mxu0 0.0
        %349 = vmatpush1.xpose.msra.mxu0 0.0
        %350 = vmatprep.subr.mxu0 0.0
        %351 = vmatpush1.xpose.msra.mxu0 0.0
        %352 = vmatprep.subr.mxu0 0.0
        %353 = vmatpush1.xpose.msra.mxu0 0.0
        %354 = vmatprep.subr.mxu0 0.0
        %355 = vmatpush1.xpose.msra.mxu0 0.0
        %356 = vmatprep.subr.mxu0 0.0
        %357 = vmatpush1.xpose.msra.mxu0 0.0
        %358 = vmatprep.subr.mxu0 0.0
        %359 = vmatpush1.xpose.msra.mxu0 0.0
        %360 = vmatprep.mubr.f32.mxu0 0.0
        %361 = vmatmul.mubr.f32.gmra.mrb[0].mxu0 %v279
        %v362 = vpop.f32.mrb[0].mxu0
        %v363 = vadd.f32 0.0, %v362
        %v364 = vpop.f32.mrb[0].mxu0
        %365 = vdwg.mxu0
        %v366 = vlaneseq
        %v367 = vand.u32 %v366, 127
        %s368 = smul.u32 %s24, 128
        %v369 = vstv %s368
        %v370 = vadd.s32 %v367, %v369
        %p371 = scmp.lt.s32.totalorder %s24, 2
        // Predicated region
        $region41: #{tpu_custom_call.1} parent=31 // pred_check
          %p372 = pneg %p371
        $region42: #{tpu_custom_call.1} parent=31 // pred_check_branch
          %374 = sbr.rel (%p372) target = $region44
        $region43: #{tpu_custom_call.1} parent=31 // pred_region
          %v375 = vld [vmem:[#allocation2] sm:$0xff]
          %376 = vmax.xlane.f32.xlu0 %v363
          %v377 = vpop.xlane.xlu0 %376
          %v378 = vmax.f32 %v375, %v377
          %v379 = vld [vmem:[#allocation3] sm:$0xff]
          %v380 = vsub.f32 %v375, %v378
          %v381 = vmul.f32 %v380, 1.442695
          %v382 = vpow.pop %v381
          %v383 = vmul.f32 %v379, %v382
          %385 = vset.pattern.permute.xlu0 0
          %386 = vperm.xlu0 %385, %v378
          %v387 = vpop.permute.xlu0 %386
          %v389 = vsub.f32 %v363, %v387
          %v390 = vmul.f32 %v389, 1.442695
          %v391 = vpow.pop %v390
          %392 = vadd.xlane.f32.xlu0 %v391
          %v393 = vpop.xlane.xlu0 %392
          %v394 = vadd.f32 %v383, %v393
          %vm395 = vcmask 7168
          %396 = vst.msk [vmem:[#allocation3] sm:$0xff] %vm395, %v394
          %397 = vst.msk [vmem:[#allocation2] sm:$0xff] %vm395, %v378
          %v398 = vld [vmem:[#allocation4] sm:$0xff]
          %v399 = vld [vmem:[%s262] sm:$0xff]
          %400 = vset.pattern.permute.xlu0 0
          %401 = vperm.xlu0 %400, %v399
          %v402 = vpop.permute.xlu0 %401
          %vm403 = vcmp.eq.s32.totalorder %v370, %v402
          %v404 = vsel %vm403, %v363, 0.0
          %405 = vadd.xlane.f32.xlu0 %v404
          %v406 = vpop.xlane.xlu0 %405
          %v407 = vadd.f32 %v398, %v406
          %408 = vst.msk [vmem:[#allocation4] sm:$0xff] %vm395, %v407
        $region44: #{tpu_custom_call.1} parent=31 // pred_fallthru
          _
        %p409 = scmp.eq.s32.totalorder %s24, 2
        // Predicated region
        $region45: #{tpu_custom_call.1} parent=31 // pred_check
          %p410 = pneg %p409
        $region46: #{tpu_custom_call.1} parent=31 // pred_check_branch
          %412 = sbr.rel (%p410) target = $region48
        $region47: #{tpu_custom_call.1} parent=31 // pred_region
          %vm413 = vcmp.lt.s32.totalorder %v370, 300
          %v414 = vsel %vm413, %v363, -1e+30
          %v415 = vld [vmem:[#allocation2] sm:$0xff]
          %416 = vmax.xlane.f32.xlu0 %v414
          %v417 = vpop.xlane.xlu0 %416
          %v418 = vmax.f32 %v415, %v417
          %v419 = vld [vmem:[#allocation3] sm:$0xff]
          %v420 = vsub.f32 %v415, %v418
          %v421 = vmul.f32 %v420, 1.442695
          %v422 = vpow.pop %v421
          %v423 = vmul.f32 %v419, %v422
          %425 = vset.pattern.permute.xlu0 0
          %426 = vperm.xlu0 %425, %v418
          %v427 = vpop.permute.xlu0 %426
          %v429 = vsub.f32 %v414, %v427
          %v430 = vmul.f32 %v429, 1.442695
          %v431 = vpow.pop %v430
          %432 = vadd.xlane.f32.xlu0 %v431
          %v433 = vpop.xlane.xlu0 %432
          %v434 = vadd.f32 %v423, %v433
          %vm435 = vcmask 7168
          %436 = vst.msk [vmem:[#allocation3] sm:$0xff] %vm435, %v434
          %437 = vst.msk [vmem:[#allocation2] sm:$0xff] %vm435, %v418
          %v438 = vld [vmem:[#allocation4] sm:$0xff]
          %v439 = vld [vmem:[%s262] sm:$0xff]
          %440 = vset.pattern.permute.xlu0 0
          %441 = vperm.xlu0 %440, %v439
          %v442 = vpop.permute.xlu0 %441
          %vm443 = vcmp.eq.s32.totalorder %v370, %v442
          %v444 = vsel %vm443, %v414, 0.0
          %445 = vadd.xlane.f32.xlu0 %v444
          %v446 = vpop.xlane.xlu0 %445
          %v447 = vadd.f32 %v438, %v446
          %448 = vst.msk [vmem:[#allocation4] sm:$0xff] %vm435, %v447
          %v449 = vlaneseq
          %v450 = vshrl.u32 %v449, 7
          %s451 = smul.u32 %s23, 8
          %v452 = vstv %s451
          %v453 = vadd.s32 %v450, %v452
          %v454 = vld [vmem:[#allocation2] sm:$0xff]
          %v455 = vld [vmem:[#allocation3] sm:$0xff]
          %v456 = vlog2.pop %v455
          %v457 = vmul.f32 %v456, 0.6931472
          %v458 = vadd.f32 %v454, %v457
          %v459 = vld [vmem:[#allocation4] sm:$0xff]
          %v460 = vsub.f32 %v458, %v459
          %vm461 = vcmp.lt.s32.totalorder %v453, 20
          %v462 = vsel %vm461, %v460, 0.0
          %463 = vst.msk [vmem:[%s270] sm:$0xff] %vm435, %v462
        $region48: #{tpu_custom_call.1} parent=31 // pred_fallthru
          _
        %p464 = scmp.lt.s32.totalorder %s22, 3
        %s465 = scalar_select %p464, %s22, 3
        %p466 = scmp.lt.s32.totalorder %s23, 2
        %s467 = scalar_select %p466, %s23, 2
        %s468 = smul.addr %s465, 3
        %s469 = sadd.s32 %s467, %s468
        %s470 = smul.addr %s469, 8
        %s471 = scalar_lea.vmem %s3, %s470
        // Predicated region
        $region49: #{tpu_custom_call.1} parent=31 // pred_check
          %p472 = pneg %p138
        $region50: #{tpu_custom_call.1} parent=31 // pred_check_branch
          %474 = sbr.rel (%p472) target = $region52
        $region51: #{tpu_custom_call.1} parent=31 // pred_region
          _
        $region52: #{tpu_custom_call.1} parent=31 // pred_fallthru
          _
      $region32: #{tpu_custom_call.1} parent=5 // pred_fallthru
        _
      %p475 = scmp.le.s32.totalorder 2, %s12
      // Predicated region
      $region53: #{tpu_custom_call.1} parent=5 // pred_check
        %p476 = pneg %p475
      $region54: #{tpu_custom_call.1} parent=5 // pred_check_branch
        %478 = sbr.rel (%p476) target = $region56
      $region55: #{tpu_custom_call.1} parent=5 // pred_region
        %s479 = ssub.s32 %s12, 2
        // Predicated region
        $region57: #{tpu_custom_call.1} parent=55 // pred_check
          %p480 = pneg %p144
        $region58: #{tpu_custom_call.1} parent=55 // pred_check_branch
          %482 = sbr.rel (%p480) target = $region60
        $region59: #{tpu_custom_call.1} parent=55 // pred_region
          %p483 = scmp.lt.s32.totalorder %s25, 3
          %s484 = scalar_select %p483, %s25, 3
          %p485 = scmp.lt.s32.totalorder %s26, 2
          %s486 = scalar_select %p485, %s26, 2
          %s487 = smul.addr %s484, 3
          %s488 = sadd.s32 %s486, %s487
          %s489 = smul.addr %s488, 8
          %s490 = scalar_lea.vmem %s3, %s489
        $region60: #{tpu_custom_call.1} parent=55 // pred_fallthru
          _
      $region56: #{tpu_custom_call.1} parent=5 // pred_fallthru
        _
    $region6: #{tpu_custom_call.1} parent=1 // loop_footer
      %s16 = sadd.s32 1, %s12
    $region7: #{tpu_custom_call.1} parent=1 // loop_footer_branch
      %11 = sbr.rel target = $region3
    $region8: #{tpu_custom_call.1} parent=1 // loop_exit
      _
    %491 = vsyncpa [#allocation6], 1
    %s492 = scalar_lea.sflag [#allocation6], 1
    %493 = vsyncpa %s492, 1

</llo_original>
